<compile_context>
chip_gen: v7x
topology: tpu7x:2x2x1
jax: 0.10.0
libtpu: 0.0.40
codegen_flags: <defaults>
</compile_context>

<pallas_src>
import jax
import jax.numpy as jnp
from jax import lax
from jax.experimental import pallas as pl
from jax.experimental.pallas import tpu as pltpu


# ----------------------------------------------------------------------------
# Fused im2col-matmul + (conv bias + BatchNorm) + ReLU kernel
# ----------------------------------------------------------------------------
def _matmul_bn_relu_kernel(p_ref, w_ref, scale_ref, shift_ref, o_ref):
    # One (TM, K) row-tile of patches against the full, VMEM-resident (K, N)
    # flattened conv weight.  f32 accumulation on the MXU.
    acc = jnp.dot(p_ref[...], w_ref[...], preferred_element_type=jnp.float32)
    # conv bias + eval-mode BatchNorm folded into one scale/shift (VPU).
    y = acc * scale_ref[...] + shift_ref[...]
    o_ref[...] = jnp.maximum(y, 0.0).astype(o_ref.dtype)  # ReLU


def _round_up(x, m):
    return ((x + m - 1) // m) * m


def _matmul_bn_relu(patches, w_flat, scale, shift, *, tm_cap=256):
    """patches: (M, K) f32, w_flat: (K, N) f32, scale/shift: (1, N) f32."""
    M, K = patches.shape
    K2, N = w_flat.shape
    assert K == K2
    # Row tile: multiple of 8 sublanes, capped so double-buffered tiles +
    # resident weights stay far under the default scoped VMEM on v7x/v6e/v5e.
    TM = min(tm_cap, _round_up(M, 8))
    grid = (pl.cdiv(M, TM),)
    return pl.pallas_call(
        _matmul_bn_relu_kernel,
        out_shape=jax.ShapeDtypeStruct((M, N), jnp.float32),
        grid=grid,
        in_specs=[
            pl.BlockSpec((TM, K), lambda i: (i, 0)),   # streamed row tiles
            pl.BlockSpec((K, N), lambda i: (0, 0)),    # weights stay resident
            pl.BlockSpec((1, N), lambda i: (0, 0)),    # folded BN scale
            pl.BlockSpec((1, N), lambda i: (0, 0)),    # folded BN shift
        ],
        out_specs=pl.BlockSpec((TM, N), lambda i: (i, 0)),
        compiler_params=pltpu.CompilerParams(
            dimension_semantics=("parallel",)),
    )(patches, w_flat, scale, shift)


# ----------------------------------------------------------------------------
# im2col glue (XLA) + layer / network wrappers
# ----------------------------------------------------------------------------
def _im2col(x_nhwc, k, stride, pad):
    B, H, W, C = x_nhwc.shape
    xp = jnp.pad(x_nhwc, ((0, 0), (pad, pad), (pad, pad), (0, 0)))
    Ho = (H + 2 * pad - k) // stride + 1
    Wo = (W + 2 * pad - k) // stride + 1
    cols = []
    for dh in range(k):
        for dw in range(k):
            cols.append(xp[:, dh:dh + stride * Ho:stride,
                              dw:dw + stride * Wo:stride, :])
    patches = jnp.concatenate(cols, axis=-1)          # (B, Ho, Wo, k*k*C)
    return patches.reshape(B * Ho * Wo, k * k * C), Ho, Wo


def _conv_bn_relu_layer(x_nhwc, layer, *, k=5, stride=2, pad=2, eps=1e-5):
    w, b, gamma, beta, mean, var = layer              # w: (Cout, Cin, k, k)
    cout, cin = w.shape[0], w.shape[1]
    patches, Ho, Wo = _im2col(x_nhwc, k, stride, pad)
    # Match im2col ordering (dh, dw, cin) -> flatten weights to (k*k*Cin, Cout).
    w_flat = jnp.transpose(w, (2, 3, 1, 0)).reshape(k * k * cin, cout)
    # Fold conv bias + eval-mode BatchNorm: y = conv*scale + shift.
    scale = gamma * lax.rsqrt(var + eps)
    shift = beta + (b - mean) * scale
    out = _matmul_bn_relu(patches, w_flat,
                          scale.reshape(1, cout), shift.reshape(1, cout))
    B = x_nhwc.shape[0]
    return out.reshape(B, Ho, Wo, cout)


def dtn_feature(x_nchw, params):
    """x_nchw: (B, 3, H, W) f32.  Returns (B, 256, H//8, W//8) f32 (NCHW)."""
    x = jnp.transpose(x_nchw, (0, 2, 3, 1)).astype(jnp.float32)   # NHWC
    for layer in params:                # Dropout2d: identity in eval mode.
        x = _conv_bn_relu_layer(x, layer)
    return jnp.transpose(x, (0, 3, 1, 2))                         # back to NCHW


# ----------------------------------------------------------------------------
# Deterministic params + pure-JAX reference
# ----------------------------------------------------------------------------
def init_params(key):
    dims = [(3, 64), (64, 128), (128, 256)]
    layers = []
    for i, (cin, cout) in enumerate(dims):
        ks = jax.random.split(jax.random.fold_in(key, i), 6)
        bound = 1.0 / float(cin * 25) ** 0.5
        w = jax.random.uniform(ks[0], (cout, cin, 5, 5), jnp.float32, -bound, bound)
        b = jax.random.uniform(ks[1], (cout,), jnp.float32, -bound, bound)
        gamma = jax.random.uniform(ks[2], (cout,), jnp.float32, 0.5, 1.5)
        beta = jax.random.uniform(ks[3], (cout,), jnp.float32, -0.5, 0.5)
        mean = jax.random.normal(ks[4], (cout,), jnp.float32) * 0.1
        var = jax.random.uniform(ks[5], (cout,), jnp.float32, 0.5, 1.5)
        layers.append((w, b, gamma, beta, mean, var))
    return layers


def reference(x_nchw, params, eps=1e-5):
    x = x_nchw.astype(jnp.float32)
    for (w, b, gamma, beta, mean, var) in params:
        x = lax.conv_general_dilated(
            x, w, window_strides=(2, 2), padding=((2, 2), (2, 2)),
            dimension_numbers=("NCHW", "OIHW", "NCHW"),
            precision=lax.Precision.HIGHEST)
        x = x + b[None, :, None, None]
        sc = (gamma * lax.rsqrt(var + eps))[None, :, None, None]
        x = (x - mean[None, :, None, None]) * sc + beta[None, :, None, None]
        x = jnp.maximum(x, 0.0)
    return x


if __name__ == "__main__":
    key = jax.random.PRNGKey(0)
    kx, kp = jax.random.split(key)

    B, C, H, W = 2, 3, 16, 16
    x = jax.random.normal(kx, (B, C, H, W), jnp.float32)
    params = init_params(kp)

    out = jax.block_until_ready(dtn_feature(x, params))
    ref = jax.block_until_ready(reference(x, params))

    assert out.shape == (B, 256, H // 8, W // 8), out.shape
    max_err = float(jnp.max(jnp.abs(out - ref)))
    assert jnp.allclose(out, ref, atol=2e-2, rtol=2e-2), f"mismatch, max|d|={max_err}"
    print("KERNEL_OK")
</pallas_src>

<mosaic_0001>
module attributes {stable_mosaic.version = 11 : i64} {
  func.func @_matmul_bn_relu_kernel(%arg0: i32, %arg1: memref<128x75xf32, #tpu.memory_space<vmem>>, %arg2: memref<75x64xf32, #tpu.memory_space<vmem>>, %arg3: memref<1x64xf32, #tpu.memory_space<vmem>>, %arg4: memref<1x64xf32, #tpu.memory_space<vmem>>, %arg5: memref<128x64xf32, #tpu.memory_space<vmem>>) attributes {dimension_semantics = [#tpu.dimension_semantics<parallel>], iteration_bounds = array<i64: 1>, scalar_prefetch = 0 : i64, scratch_operands = 0 : i64, tpu.core_type = #tpu.core_type<tc>, window_params = [{transform_indices = @transform_0, window_bounds = array<i64: 128, 75>}, {pipeline_mode = #tpu.pipeline_mode<synchronous>, transform_indices = @transform_1, window_bounds = array<i64: 75, 64>}, {pipeline_mode = #tpu.pipeline_mode<synchronous>, transform_indices = @transform_2, window_bounds = array<i64: 1, 64>}, {pipeline_mode = #tpu.pipeline_mode<synchronous>, transform_indices = @transform_3, window_bounds = array<i64: 1, 64>}, {transform_indices = @transform_4, window_bounds = array<i64: 128, 64>}]} {
    %c0 = arith.constant 0 : index
    %c0_0 = arith.constant 0 : index
    %0 = vector.load %arg1[%c0, %c0_0] : memref<128x75xf32, #tpu.memory_space<vmem>>, vector<128x75xf32>
    %c0_1 = arith.constant 0 : index
    %c0_2 = arith.constant 0 : index
    %1 = vector.load %arg2[%c0_1, %c0_2] : memref<75x64xf32, #tpu.memory_space<vmem>>, vector<75x64xf32>
    %cst = arith.constant dense<0.000000e+00> : vector<128x64xf32>
    %2 = tpu.matmul %0, %1, %cst {dimension_numbers = #tpu.dot_dimension_numbers<[1], [0], [0], [1], [0, 0, 1, 1], [], []>} : vector<128x75xf32>, vector<75x64xf32>, vector<128x64xf32> -> vector<128x64xf32>
    %c0_3 = arith.constant 0 : index
    %c0_4 = arith.constant 0 : index
    %3 = vector.load %arg3[%c0_3, %c0_4] : memref<1x64xf32, #tpu.memory_space<vmem>>, vector<1x64xf32>
    %4 = vector.broadcast %3 : vector<1x64xf32> to vector<128x64xf32>
    %5 = arith.mulf %2, %4 : vector<128x64xf32>
    %c0_5 = arith.constant 0 : index
    %c0_6 = arith.constant 0 : index
    %6 = vector.load %arg4[%c0_5, %c0_6] : memref<1x64xf32, #tpu.memory_space<vmem>>, vector<1x64xf32>
    %7 = vector.broadcast %6 : vector<1x64xf32> to vector<128x64xf32>
    %8 = arith.addf %5, %7 : vector<128x64xf32>
    %cst_7 = arith.constant 0.000000e+00 : f32
    %9 = vector.broadcast %cst_7 : f32 to vector<128x64xf32>
    %10 = arith.maximumf %8, %9 : vector<128x64xf32>
    %c0_8 = arith.constant 0 : index
    %c0_9 = arith.constant 0 : index
    %11 = vector.load %arg5[%c0_8, %c0_9] : memref<128x64xf32, #tpu.memory_space<vmem>>, vector<128x64xf32>
    tpu.vector_store %arg5[%c0_8, %c0_9], %10 {strides = array<i32>} : memref<128x64xf32, #tpu.memory_space<vmem>>, vector<128x64xf32>,
    return
  }
  func.func @transform_0(%arg0: i32) -> (i32, i32) {
    %c0_i32 = arith.constant 0 : i32
    %c0_i32_0 = arith.constant 0 : i32
    return %arg0, %c0_i32 : i32, i32
  }
  func.func @transform_1(%arg0: i32) -> (i32, i32) {
    %c0_i32 = arith.constant 0 : i32
    %c0_i32_0 = arith.constant 0 : i32
    %c0_i32_1 = arith.constant 0 : i32
    return %c0_i32, %c0_i32_0 : i32, i32
  }
  func.func @transform_2(%arg0: i32) -> (i32, i32) {
    %c0_i32 = arith.constant 0 : i32
    %c0_i32_0 = arith.constant 0 : i32
    %c0_i32_1 = arith.constant 0 : i32
    return %c0_i32, %c0_i32_0 : i32, i32
  }
  func.func @transform_3(%arg0: i32) -> (i32, i32) {
    %c0_i32 = arith.constant 0 : i32
    %c0_i32_0 = arith.constant 0 : i32
    %c0_i32_1 = arith.constant 0 : i32
    return %c0_i32, %c0_i32_0 : i32, i32
  }
  func.func @transform_4(%arg0: i32) -> (i32, i32) {
    %c0_i32 = arith.constant 0 : i32
    %c0_i32_0 = arith.constant 0 : i32
    return %arg0, %c0_i32 : i32, i32
  }
}

</mosaic_0001>

<llo_original>
// kernel: tpu_custom_call.1
$region0: #{tpu_custom_call.1}
  #allocation0 [shape = 'u32[]', space=smem, size = 0x4, offset = 0x4, fixed_abs, tag = 'smem constant byte address 0x4 - core index']
  #allocation1 [shape = 'u32[144,128]{1,0:T(1,128)}', space=vmem, size = 0x12000, scoped, tag = 'internal scratch']
  %s0 = inlined_call_operand.vmem [shape: f32[128,75], index: 0, kind: input, shape index: {}]
  %s1 = inlined_call_operand.vmem [shape: f32[75,64], index: 1, kind: input, shape index: {}]
  %s2 = inlined_call_operand.vmem [shape: f32[1,64], index: 2, kind: input, shape index: {}]
  %s3 = inlined_call_operand.vmem [shape: f32[1,64], index: 3, kind: input, shape index: {}]
  %s4 = inlined_call_operand.vmem [shape: f32[128,64], index: 4, kind: output, shape index: {}]
  %s5 = sld [smem:[#allocation0]]
  $region26: #{tpu_custom_call.1} parent=0
    _
  %s7 = ssub.s32 1, %s5
  %s8 = scalar_select 0, %s7, %s5
  // Predicated region
  $region2: #{tpu_custom_call.1} parent=0 // pred_check
    _
  $region3: #{tpu_custom_call.1} parent=0 // pred_check_branch
    %10 = sbr.rel (0) target = $region5
  $region4: #{tpu_custom_call.1} parent=0 // pred_region
    _
  $region5: #{tpu_custom_call.1} parent=0 // pred_fallthru
    _
  // Predicated region
  $region6: #{tpu_custom_call.1} parent=0 // pred_check
    _
  $region7: #{tpu_custom_call.1} parent=0 // pred_check_branch
    %12 = sbr.rel (0) target = $region9
  $region8: #{tpu_custom_call.1} parent=0 // pred_region
    _
  $region9: #{tpu_custom_call.1} parent=0 // pred_fallthru
    _
  // Predicated region
  $region10: #{tpu_custom_call.1} parent=0 // pred_check
    _
  $region11: #{tpu_custom_call.1} parent=0 // pred_check_branch
    %14 = sbr.rel (0) target = $region13
  $region12: #{tpu_custom_call.1} parent=0 // pred_region
    _
  $region13: #{tpu_custom_call.1} parent=0 // pred_fallthru
    _
  // Predicated region
  $region14: #{tpu_custom_call.1} parent=0 // pred_check
    _
  $region15: #{tpu_custom_call.1} parent=0 // pred_check_branch
    %16 = sbr.rel (0) target = $region17
  $region16: #{tpu_custom_call.1} parent=0 // pred_region
    _
  $region17: #{tpu_custom_call.1} parent=0 // pred_fallthru
    _
  %v17 = vld [vmem:[%s0] sm:$0xff]
  %v18 = vld [vmem:[%s0 + $0x8] sm:$0xff]
  %v19 = vld [vmem:[%s0 + $0x10] sm:$0xff]
  %v20 = vld [vmem:[%s0 + $0x18] sm:$0xff]
  %v21 = vld [vmem:[%s0 + $0x20] sm:$0xff]
  %v22 = vld [vmem:[%s0 + $0x28] sm:$0xff]
  %v23 = vld [vmem:[%s0 + $0x30] sm:$0xff]
  %v24 = vld [vmem:[%s0 + $0x38] sm:$0xff]
  %v25 = vld [vmem:[%s0 + $0x40] sm:$0xff]
  %v26 = vld [vmem:[%s0 + $0x48] sm:$0xff]
  %v27 = vld [vmem:[%s0 + $0x50] sm:$0xff]
  %v28 = vld [vmem:[%s0 + $0x58] sm:$0xff]
  %v29 = vld [vmem:[%s0 + $0x60] sm:$0xff]
  %v30 = vld [vmem:[%s0 + $0x68] sm:$0xff]
  %v31 = vld [vmem:[%s0 + $0x70] sm:$0xff]
  %v32 = vld [vmem:[%s0 + $0x78] sm:$0xff]
  %v33 = vld [vmem:[%s1] sm:$0xff]
  %v34 = vld [vmem:[%s1 + $0x8] sm:$0xff]
  %v35 = vld [vmem:[%s1 + $0x10] sm:$0xff]
  %v36 = vld [vmem:[%s1 + $0x18] sm:$0xff]
  %v37 = vld [vmem:[%s1 + $0x20] sm:$0xff]
  %v38 = vld [vmem:[%s1 + $0x28] sm:$0xff]
  %v39 = vld [vmem:[%s1 + $0x30] sm:$0xff]
  %v40 = vld [vmem:[%s1 + $0x38] sm:$0xff]
  %v41 = vld [vmem:[%s1 + $0x40] sm:$0xff]
  %v42 = vld [vmem:[%s1 + $0x48] sm:$0x7]
  %vm43 = vcmask 613376
  %v45 = vsel %vm43, %v17, 0
  %v48 = vsel %vm43, %v18, 0
  %v51 = vsel %vm43, %v19, 0
  %v54 = vsel %vm43, %v20, 0
  %v57 = vsel %vm43, %v21, 0
  %v60 = vsel %vm43, %v22, 0
  %v63 = vsel %vm43, %v23, 0
  %v66 = vsel %vm43, %v24, 0
  %v69 = vsel %vm43, %v25, 0
  %v72 = vsel %vm43, %v26, 0
  %v75 = vsel %vm43, %v27, 0
  %v78 = vsel %vm43, %v28, 0
  %v81 = vsel %vm43, %v29, 0
  %v84 = vsel %vm43, %v30, 0
  %v87 = vsel %vm43, %v31, 0
  %v90 = vsel %vm43, %v32, 0
  %vm92 = vcmask 1042432
  %v94 = vsel %vm92, %v42, 0
  %96 = vmatprep.subr.mxu0 0.0
  %97 = vmatpush1.msra.mxu0 %v33
  %98 = vmatprep.subr.mxu0 0.0
  %99 = vmatpush1.msra.mxu0 %v34
  %100 = vmatprep.subr.mxu0 0.0
  %101 = vmatpush1.msra.mxu0 %v35
  %102 = vmatprep.subr.mxu0 0.0
  %103 = vmatpush1.msra.mxu0 %v36
  %104 = vmatprep.subr.mxu0 0.0
  %105 = vmatpush1.msra.mxu0 %v37
  %106 = vmatprep.subr.mxu0 0.0
  %107 = vmatpush1.msra.mxu0 %v38
  %108 = vmatprep.subr.mxu0 0.0
  %109 = vmatpush1.msra.mxu0 %v39
  %110 = vmatprep.subr.mxu0 0.0
  %111 = vmatpush1.msra.mxu0 %v40
  %112 = vmatprep.subr.mxu0 0.0
  %113 = vmatpush1.msra.mxu0 %v41
  %114 = vmatprep.subr.mxu0 0.0
  %115 = vmatpush1.msra.mxu0 %v94
  %116 = vmatprep.subr.mxu0 0.0
  %117 = vmatpush1.msra.mxu0 0.0
  %118 = vmatprep.subr.mxu0 0.0
  %119 = vmatpush1.msra.mxu0 0.0
  %120 = vmatprep.subr.mxu0 0.0
  %121 = vmatpush1.msra.mxu0 0.0
  %122 = vmatprep.subr.mxu0 0.0
  %123 = vmatpush1.msra.mxu0 0.0
  %124 = vmatprep.subr.mxu0 0.0
  %125 = vmatpush1.msra.mxu0 0.0
  %126 = vmatprep.subr.mxu0 0.0
  %127 = vmatpush1.msra.mxu0 0.0
  %128 = vmatprep.subr.mxu0 0.0
  %129 = vmatpush1.msra.mxu0 0.0
  %130 = vmatprep.subr.mxu0 0.0
  %131 = vmatpush1.msra.mxu0 0.0
  %132 = vmatprep.subr.mxu0 0.0
  %133 = vmatpush1.msra.mxu0 0.0
  %134 = vmatprep.subr.mxu0 0.0
  %135 = vmatpush1.msra.mxu0 0.0
  %136 = vmatprep.subr.mxu0 0.0
  %137 = vmatpush1.msra.mxu0 0.0
  %138 = vmatprep.subr.mxu0 0.0
  %139 = vmatpush1.msra.mxu0 0.0
  %140 = vmatprep.subr.mxu0 0.0
  %141 = vmatpush1.msra.mxu0 0.0
  %142 = vmatprep.subr.mxu0 0.0
  %143 = vmatpush1.msra.mxu0 0.0
  %144 = vmatprep.subr.mxu0 0.0
  %145 = vmatpush1.msra.mxu0 0.0
  %146 = vmatprep.subr.mxu0 0.0
  %147 = vmatpush1.msra.mxu0 0.0
  %148 = vmatprep.subr.mxu0 0.0
  %149 = vmatpush1.msra.mxu0 0.0
  %150 = vmatprep.subr.mxu0 0.0
  %151 = vmatpush1.msra.mxu0 0.0
  %152 = vmatprep.subr.mxu0 0.0
  %153 = vmatpush1.msra.mxu0 0.0
  %154 = vmatprep.subr.mxu0 0.0
  %155 = vmatpush1.msra.mxu0 0.0
  %156 = vmatprep.subr.mxu0 0.0
  %157 = vmatpush1.msra.mxu0 0.0
  %158 = vmatprep.subr.mxu0 0.0
  %159 = vmatpush1.msra.mxu0 0.0
  %160 = vmatprep.mubr.f32.mxu0 0.0
  %161 = vmatmul.mubr.f32.gmra.mrb[0].mxu0 %v45
  %v162 = vpop.f32.mrb[0].mxu0
  %v163 = vadd.f32 0.0, %v162
  %v164 = vpop.f32.mrb[0].mxu0
  %165 = vmatprep.mubr.f32.mxu0 0.0
  %166 = vmatmul.mubr.f32.gmra.mrb[0].mxu0 %v48
  %v167 = vpop.f32.mrb[0].mxu0
  %v168 = vadd.f32 0.0, %v167
  %v169 = vpop.f32.mrb[0].mxu0
  %170 = vmatprep.mubr.f32.mxu0 0.0
  %171 = vmatmul.mubr.f32.gmra.mrb[0].mxu0 %v51
  %v172 = vpop.f32.mrb[0].mxu0
  %v173 = vadd.f32 0.0, %v172
  %v174 = vpop.f32.mrb[0].mxu0
  %175 = vmatprep.mubr.f32.mxu0 0.0
  %176 = vmatmul.mubr.f32.gmra.mrb[0].mxu0 %v54
  %v177 = vpop.f32.mrb[0].mxu0
  %v178 = vadd.f32 0.0, %v177
  %v179 = vpop.f32.mrb[0].mxu0
  %180 = vmatprep.mubr.f32.mxu0 0.0
  %181 = vmatmul.mubr.f32.gmra.mrb[0].mxu0 %v57
  %v182 = vpop.f32.mrb[0].mxu0
  %v183 = vadd.f32 0.0, %v182
  %v184 = vpop.f32.mrb[0].mxu0
  %185 = vmatprep.mubr.f32.mxu0 0.0
  %186 = vmatmul.mubr.f32.gmra.mrb[0].mxu0 %v60
  %v187 = vpop.f32.mrb[0].mxu0
  %v188 = vadd.f32 0.0, %v187
  %v189 = vpop.f32.mrb[0].mxu0
  %190 = vmatprep.mubr.f32.mxu0 0.0
  %191 = vmatmul.mubr.f32.gmra.mrb[0].mxu0 %v63
  %v192 = vpop.f32.mrb[0].mxu0
  %v193 = vadd.f32 0.0, %v192
  %v194 = vpop.f32.mrb[0].mxu0
  %195 = vmatprep.mubr.f32.mxu0 0.0
  %196 = vmatmul.mubr.f32.gmra.mrb[0].mxu0 %v66
  %v197 = vpop.f32.mrb[0].mxu0
  %v198 = vadd.f32 0.0, %v197
  %v199 = vpop.f32.mrb[0].mxu0
  %200 = vmatprep.mubr.f32.mxu0 0.0
  %201 = vmatmul.mubr.f32.gmra.mrb[0].mxu0 %v69
  %v202 = vpop.f32.mrb[0].mxu0
  %v203 = vadd.f32 0.0, %v202
  %v204 = vpop.f32.mrb[0].mxu0
  %205 = vmatprep.mubr.f32.mxu0 0.0
  %206 = vmatmul.mubr.f32.gmra.mrb[0].mxu0 %v72
  %v207 = vpop.f32.mrb[0].mxu0
  %v208 = vadd.f32 0.0, %v207
  %v209 = vpop.f32.mrb[0].mxu0
  %210 = vmatprep.mubr.f32.mxu0 0.0
  %211 = vmatmul.mubr.f32.gmra.mrb[0].mxu0 %v75
  %v212 = vpop.f32.mrb[0].mxu0
  %v213 = vadd.f32 0.0, %v212
  %v214 = vpop.f32.mrb[0].mxu0
  %215 = vmatprep.mubr.f32.mxu0 0.0
  %216 = vmatmul.mubr.f32.gmra.mrb[0].mxu0 %v78
  %v217 = vpop.f32.mrb[0].mxu0
  %v218 = vadd.f32 0.0, %v217
  %v219 = vpop.f32.mrb[0].mxu0
  %220 = vmatprep.mubr.f32.mxu0 0.0
  %221 = vmatmul.mubr.f32.gmra.mrb[0].mxu0 %v81
  %v222 = vpop.f32.mrb[0].mxu0
  %v223 = vadd.f32 0.0, %v222
  %v224 = vpop.f32.mrb[0].mxu0
  %225 = vmatprep.mubr.f32.mxu0 0.0
  %226 = vmatmul.mubr.f32.gmra.mrb[0].mxu0 %v84
  %v227 = vpop.f32.mrb[0].mxu0
  %v228 = vadd.f32 0.0, %v227
  %v229 = vpop.f32.mrb[0].mxu0
  %230 = vmatprep.mubr.f32.mxu0 0.0
  %231 = vmatmul.mubr.f32.gmra.mrb[0].mxu0 %v87
  %v232 = vpop.f32.mrb[0].mxu0
  %v233 = vadd.f32 0.0, %v232
  %v234 = vpop.f32.mrb[0].mxu0
  %235 = vmatprep.mubr.f32.mxu0 0.0
  %236 = vmatmul.mubr.f32.gmra.mrb[0].mxu0 %v90
  %v237 = vpop.f32.mrb[0].mxu0
  %v238 = vadd.f32 0.0, %v237
  %v239 = vpop.f32.mrb[0].mxu0
  %240 = vdwg.mxu0
  %v241 = vld [vmem:[%s2] sm:$0x1]
  %v243 = vlaneseq
  %v244 = vshrl.u32 %v243, 7
  %v245 = vsub.s32 0, %v244
  %v246 = vrot.slane %v241, %v245
  %v248 = vmul.f32 %v163, %v246
  %v249 = vmul.f32 %v168, %v246
  %v250 = vmul.f32 %v173, %v246
  %v251 = vmul.f32 %v178, %v246
  %v252 = vmul.f32 %v183, %v246
  %v253 = vmul.f32 %v188, %v246
  %v254 = vmul.f32 %v193, %v246
  %v255 = vmul.f32 %v198, %v246
  %v256 = vmul.f32 %v203, %v246
  %v257 = vmul.f32 %v208, %v246
  %v258 = vmul.f32 %v213, %v246
  %v259 = vmul.f32 %v218, %v246
  %v260 = vmul.f32 %v223, %v246
  %v261 = vmul.f32 %v228, %v246
  %v262 = vmul.f32 %v233, %v246
  %v263 = vmul.f32 %v238, %v246
  %v264 = vld [vmem:[%s3] sm:$0x1]
  %v266 = vlaneseq
  %v267 = vshrl.u32 %v266, 7
  %v268 = vsub.s32 0, %v267
  %v269 = vrot.slane %v264, %v268
  %v271 = vadd.f32 %v248, %v269
  %v272 = vadd.f32 %v249, %v269
  %v273 = vadd.f32 %v250, %v269
  %v274 = vadd.f32 %v251, %v269
  %v275 = vadd.f32 %v252, %v269
  %v276 = vadd.f32 %v253, %v269
  %v277 = vadd.f32 %v254, %v269
  %v278 = vadd.f32 %v255, %v269
  %v279 = vadd.f32 %v256, %v269
  %v280 = vadd.f32 %v257, %v269
  %v281 = vadd.f32 %v258, %v269
  %v282 = vadd.f32 %v259, %v269
  %v283 = vadd.f32 %v260, %v269
  %v284 = vadd.f32 %v261, %v269
  %v285 = vadd.f32 %v262, %v269
  %v286 = vadd.f32 %v263, %v269
  %v287 = vmax.f32 %v271, 0.0
  %v288 = vmax.f32 %v272, 0.0
  %v289 = vmax.f32 %v273, 0.0
  %v290 = vmax.f32 %v274, 0.0
  %v291 = vmax.f32 %v275, 0.0
  %v292 = vmax.f32 %v276, 0.0
  %v293 = vmax.f32 %v277, 0.0
  %v294 = vmax.f32 %v278, 0.0
  %v295 = vmax.f32 %v279, 0.0
  %v296 = vmax.f32 %v280, 0.0
  %v297 = vmax.f32 %v281, 0.0
  %v298 = vmax.f32 %v282, 0.0
  %v299 = vmax.f32 %v283, 0.0
  %v300 = vmax.f32 %v284, 0.0
  %v301 = vmax.f32 %v285, 0.0
  %v302 = vmax.f32 %v286, 0.0
  %vm303 = vcmask 523264
  %304 = vst.msk [vmem:[%s4] sm:$0xff] %vm303, %v287
  %305 = vst.msk [vmem:[%s4 + $0x8] sm:$0xff] %vm303, %v288
  %306 = vst.msk [vmem:[%s4 + $0x10] sm:$0xff] %vm303, %v289
  %307 = vst.msk [vmem:[%s4 + $0x18] sm:$0xff] %vm303, %v290
  %308 = vst.msk [vmem:[%s4 + $0x20] sm:$0xff] %vm303, %v291
  %309 = vst.msk [vmem:[%s4 + $0x28] sm:$0xff] %vm303, %v292
  %310 = vst.msk [vmem:[%s4 + $0x30] sm:$0xff] %vm303, %v293
  %311 = vst.msk [vmem:[%s4 + $0x38] sm:$0xff] %vm303, %v294
  %312 = vst.msk [vmem:[%s4 + $0x40] sm:$0xff] %vm303, %v295
  %313 = vst.msk [vmem:[%s4 + $0x48] sm:$0xff] %vm303, %v296
  %314 = vst.msk [vmem:[%s4 + $0x50] sm:$0xff] %vm303, %v297
  %315 = vst.msk [vmem:[%s4 + $0x58] sm:$0xff] %vm303, %v298
  %316 = vst.msk [vmem:[%s4 + $0x60] sm:$0xff] %vm303, %v299
  %317 = vst.msk [vmem:[%s4 + $0x68] sm:$0xff] %vm303, %v300
  %318 = vst.msk [vmem:[%s4 + $0x70] sm:$0xff] %vm303, %v301
  %319 = vst.msk [vmem:[%s4 + $0x78] sm:$0xff] %vm303, %v302
  // Predicated region
  $region18: #{tpu_custom_call.1} parent=0 // pred_check
    _
  $region19: #{tpu_custom_call.1} parent=0 // pred_check_branch
    %321 = sbr.rel (0) target = $region21
  $region20: #{tpu_custom_call.1} parent=0 // pred_region
    _
  $region21: #{tpu_custom_call.1} parent=0 // pred_fallthru
    _
  // Predicated region
  $region22: #{tpu_custom_call.1} parent=0 // pred_check
    _
  $region23: #{tpu_custom_call.1} parent=0 // pred_check_branch
    %323 = sbr.rel (0) target = $region25
  $region24: #{tpu_custom_call.1} parent=0 // pred_region
    _
  $region25: #{tpu_custom_call.1} parent=0 // pred_fallthru
    _

</llo_original>
